<compile_context>
chip_gen: v5e
topology: v5e:2x2
jax: 0.10.0
libtpu: 0.0.40
codegen_flags: <defaults>
</compile_context>

<pallas_src>
import jax
import jax.numpy as jnp
from jax.experimental import pallas as pl
from jax.experimental.pallas import tpu as pltpu

LANE = 128


def _make_kernel(n_blocks, num_units):
    """Kernel factory for `n_blocks` (= depth-1 for depth>1) hidden blocks."""

    def kernel(lhs_ref, w0e_ref, *refs):
        # refs layout: [w_1, ..., w_{n_blocks-1}, wf_pad, bf_pad, out]
        out_ref = refs[-1]
        bf_ref = refs[-2]
        wf_ref = refs[-3]
        w_refs = refs[:n_blocks - 1]
        H = num_units

        # ONE MXU op: layer-0 matmul fused with every timestep-embedding(+bias)
        # lookup (LHS carries xc and the one-hot rows; f32 accumulation).
        z_all = jnp.dot(lhs_ref[...], w0e_ref[...],
                        preferred_element_type=jnp.float32)   # [TB, n_blocks*H]

        h = jnp.maximum(z_all[:, :H], 0.0)                    # block 0 ReLU (f32)
        for i in range(1, n_blocks):
            z = jnp.dot(h.astype(jnp.bfloat16), w_refs[i - 1][...],
                        preferred_element_type=jnp.float32)   # [TB, H] f32 acc
            z = z + z_all[:, i * H:(i + 1) * H]               # + (b_i + e_i[t])
            h = jnp.maximum(z, 0.0)

        out = jnp.dot(h.astype(jnp.bfloat16), wf_ref[...],
                      preferred_element_type=jnp.float32) + bf_ref[...]
        out_ref[...] = out.astype(out_ref.dtype)              # [TB, 128] lane-dense

    return kernel


def prepare_kernel_params(params):
    """Offline folding: bias->embedding tables, fused layer-0 RHS, padding, bf16."""
    blocks = params["blocks"]                 # list of (w [in,H], b [1,H], e [S,H]) f32
    wf, bf = params["final"]                  # [H, data_dim], [1, data_dim]
    n_blocks = len(blocks)
    H = wf.shape[0]
    data_dim = wf.shape[1]
    n_steps = blocks[0][2].shape[0]

    # Fold each layer bias into its embedding table (exact), concat over blocks.
    e_all = jnp.concatenate([e + b for (_, b, e) in blocks], axis=1)   # [S, n_blocks*H]
    # bf16 hi/lo split: one-hot rows are exact in bf16, so e_hi[t] + e_lo[t]
    # reproduces (e[t] + b) to ~f32 accuracy through the bf16 MXU pass.
    e_hi = e_all.astype(jnp.bfloat16)
    e_lo = (e_all - e_hi.astype(jnp.float32)).astype(jnp.bfloat16)

    # Layer-0 weight: K padded to a multiple of 8, placed in cols 0:H of the
    # fused RHS (zeros elsewhere so later blocks get only emb+bias).
    w0 = blocks[0][0]
    k0 = w0.shape[0]
    k_pad = ((k0 + 7) // 8) * 8
    w0_blk = jnp.pad(w0, ((0, k_pad - k0), (0, (n_blocks - 1) * H))).astype(jnp.bfloat16)

    # Fused RHS: [k_pad + 2*n_steps, n_blocks*H] bf16.
    w0e = jnp.concatenate([w0_blk, e_hi, e_lo], axis=0)

    ws = [w.astype(jnp.bfloat16) for (w, _, _) in blocks[1:]]

    # Lane-dense final projection: zero-pad output dim to 128 lanes.
    n_pad = max(((data_dim + LANE - 1) // LANE) * LANE, LANE)
    wf_pad = jnp.pad(wf, ((0, 0), (0, n_pad - data_dim))).astype(jnp.bfloat16)
    bf_pad = jnp.pad(bf, ((0, 0), (0, n_pad - data_dim)))              # f32

    return dict(w0e=w0e, ws=ws, wf_pad=wf_pad, bf_pad=bf_pad,
                k_pad=k_pad, n_steps=n_steps, out_pad=n_pad,
                data_dim=data_dim, num_units=H, n_blocks=n_blocks)


def make_forward(kp, tile_b=None):
    """Build a jitted forward(x, c, t) closing over the prepared parameters."""
    n_blocks = kp["n_blocks"]
    H = kp["num_units"]
    k_pad = kp["k_pad"]
    n_steps = kp["n_steps"]
    out_pad = kp["out_pad"]
    data_dim = kp["data_dim"]
    k_tot = k_pad + 2 * n_steps
    weights = [kp["w0e"]] + list(kp["ws"]) + [kp["wf_pad"], kp["bf_pad"]]
    kernel = _make_kernel(n_blocks, H)

    @jax.jit
    def forward(x, c, t):
        # NOTE: like nn.Embedding, t must lie in [0, n_steps); out-of-range t
        # silently yields a zero embedding here instead of raising.
        B = x.shape[0]
        tb = tile_b if tile_b is not None else min(256, ((B + 7) // 8) * 8)
        Bp = ((B + tb - 1) // tb) * tb

        # Fused LHS: [xc (K-padded) | onehot | onehot], bf16 (one pre-kernel fusion).
        xc = jnp.concatenate([x, c], axis=1)
        xc = jnp.pad(xc, ((0, Bp - B), (0, k_pad - xc.shape[1])))
        t_p = jnp.pad(t.astype(jnp.int32), (0, Bp - B))
        onehot = (t_p[:, None] ==
                  jnp.arange(n_steps, dtype=jnp.int32)[None, :]).astype(jnp.float32)
        lhs = jnp.concatenate([xc, onehot, onehot], axis=1).astype(jnp.bfloat16)

        flops = 2 * Bp * (k_tot * n_blocks * H + (n_blocks - 1) * H * H + H * out_pad)
        bytes_accessed = int(Bp * k_tot * 2
                             + sum(int(w.size) * w.dtype.itemsize for w in weights)
                             + Bp * out_pad * 4)

        out_full = pl.pallas_call(
            kernel,
            out_shape=jax.ShapeDtypeStruct((Bp, out_pad), jnp.float32),
            grid=(Bp // tb,),
            in_specs=[pl.BlockSpec((tb, k_tot), lambda i: (i, 0))]
                     + [pl.BlockSpec(w.shape, lambda i: (0, 0)) for w in weights],
            out_specs=pl.BlockSpec((tb, out_pad), lambda i: (i, 0)),
            compiler_params=pltpu.CompilerParams(
                dimension_semantics=("parallel",)),
            cost_estimate=pl.CostEstimate(flops=flops, transcendentals=0,
                                          bytes_accessed=bytes_accessed),
        )(lhs, *weights)
        return out_full[:B, :data_dim]

    return forward


def init_params(key, n_steps, cond_dim, data_dim, num_units, depth):
    """Deterministic synthetic parameters matching the module's shapes."""
    n_blocks = depth - 1 if depth > 1 else 1
    keys = jax.random.split(key, 3 * n_blocks + 2)
    blocks = []
    in_dim = cond_dim + data_dim
    ki = 0
    for i in range(n_blocks):
        fan_in = in_dim if i == 0 else num_units
        bound = 1.0 / jnp.sqrt(fan_in)
        w = jax.random.uniform(keys[ki], (fan_in, num_units),
                               minval=-bound, maxval=bound, dtype=jnp.float32)
        b = jax.random.uniform(keys[ki + 1], (1, num_units),
                               minval=-bound, maxval=bound, dtype=jnp.float32)
        e = jax.random.normal(keys[ki + 2], (n_steps, num_units),
                              dtype=jnp.float32)   # nn.Embedding ~ N(0,1)
        blocks.append((w, b, e))
        ki += 3
    bound = 1.0 / jnp.sqrt(num_units)
    wf = jax.random.uniform(keys[ki], (num_units, data_dim),
                            minval=-bound, maxval=bound, dtype=jnp.float32)
    bf = jax.random.uniform(keys[ki + 1], (1, data_dim),
                            minval=-bound, maxval=bound, dtype=jnp.float32)
    return {"blocks": blocks, "final": (wf, bf)}


def reference_forward_f32(x, c, t, params):
    """Pure-f32 JAX reference mirroring the PyTorch forward."""
    h = jnp.concatenate([x, c], axis=1)
    for (w, b, e) in params["blocks"]:
        t_emb = e[t]
        h = h @ w + b
        h = h + t_emb
        h = jnp.maximum(h, 0.0)
    wf, bf = params["final"]
    return h @ wf + bf


def reference_forward_bf16(x, c, t, params):
    """Reference matching the kernel's precision (bf16 weights, f32 accum/emb)."""
    h = jnp.concatenate([x, c], axis=1)
    for (w, b, e) in params["blocks"]:
        z = jnp.dot(h.astype(jnp.bfloat16), w.astype(jnp.bfloat16),
                    preferred_element_type=jnp.float32)
        h = jnp.maximum(z + (e[t] + b), 0.0)
    wf, bf = params["final"]
    return jnp.dot(h.astype(jnp.bfloat16), wf.astype(jnp.bfloat16),
                   preferred_element_type=jnp.float32) + bf


if __name__ == "__main__":
    # Small shapes consistent with the module defaults.
    B = 8
    n_steps = 16
    cond_dim = 6
    data_dim = 1
    num_units = 128
    depth = 4

    key = jax.random.PRNGKey(0)
    kx, kc, kt, kp_key = jax.random.split(key, 4)
    x = jax.random.normal(kx, (B, data_dim), dtype=jnp.float32)
    c = jax.random.normal(kc, (B, cond_dim), dtype=jnp.float32)
    t = jax.random.randint(kt, (B,), 0, n_steps, dtype=jnp.int32)

    params = init_params(kp_key, n_steps, cond_dim, data_dim, num_units, depth)
    kparams = prepare_kernel_params(params)
    forward = make_forward(kparams)

    out = jax.block_until_ready(forward(x, c, t))

    ref_match = reference_forward_bf16(x, c, t, params)   # precision-matched ref
    ref_f32 = reference_forward_f32(x, c, t, params)      # module-faithful f32 ref

    assert out.shape == (B, data_dim)
    assert jnp.allclose(out, ref_match, atol=1e-3, rtol=1e-3), (out, ref_match)
    assert jnp.allclose(out, ref_f32, atol=5e-2, rtol=5e-2), (out, ref_f32)

    print("KERNEL_OK")
</pallas_src>

<mosaic_0001>
module attributes {stable_mosaic.version = 11 : i64} {
  func.func @kernel(%arg0: i32, %arg1: memref<8x40xbf16, #tpu.memory_space<vmem>>, %arg2: memref<40x384xbf16, #tpu.memory_space<vmem>>, %arg3: memref<128x128xbf16, #tpu.memory_space<vmem>>, %arg4: memref<128x128xbf16, #tpu.memory_space<vmem>>, %arg5: memref<128x128xbf16, #tpu.memory_space<vmem>>, %arg6: memref<1x128xf32, #tpu.memory_space<vmem>>, %arg7: memref<8x128xf32, #tpu.memory_space<vmem>>) attributes {dimension_semantics = [#tpu.dimension_semantics<parallel>], iteration_bounds = array<i64: 1>, scalar_prefetch = 0 : i64, scratch_operands = 0 : i64, tpu.core_type = #tpu.core_type<tc>, window_params = [{transform_indices = @transform_0, window_bounds = array<i64: 8, 40>}, {pipeline_mode = #tpu.pipeline_mode<synchronous>, transform_indices = @transform_1, window_bounds = array<i64: 40, 384>}, {pipeline_mode = #tpu.pipeline_mode<synchronous>, transform_indices = @transform_2, window_bounds = array<i64: 128, 128>}, {pipeline_mode = #tpu.pipeline_mode<synchronous>, transform_indices = @transform_3, window_bounds = array<i64: 128, 128>}, {pipeline_mode = #tpu.pipeline_mode<synchronous>, transform_indices = @transform_4, window_bounds = array<i64: 128, 128>}, {pipeline_mode = #tpu.pipeline_mode<synchronous>, transform_indices = @transform_5, window_bounds = array<i64: 1, 128>}, {transform_indices = @transform_6, window_bounds = array<i64: 8, 128>}]} {
    %c0 = arith.constant 0 : index
    %c0_0 = arith.constant 0 : index
    %0 = vector.load %arg1[%c0, %c0_0] : memref<8x40xbf16, #tpu.memory_space<vmem>>, vector<8x40xbf16>
    %c0_1 = arith.constant 0 : index
    %c0_2 = arith.constant 0 : index
    %1 = vector.load %arg2[%c0_1, %c0_2] : memref<40x384xbf16, #tpu.memory_space<vmem>>, vector<40x384xbf16>
    %cst = arith.constant dense<0.000000e+00> : vector<8x384xf32>
    %2 = tpu.matmul %0, %1, %cst {dimension_numbers = #tpu.dot_dimension_numbers<[1], [0], [0], [1], [0, 0, 1, 1], [], []>} : vector<8x40xbf16>, vector<40x384xbf16>, vector<8x384xf32> -> vector<8x384xf32>
    %3 = vector.extract_strided_slice %2 {offsets = [0, 0], sizes = [8, 128], strides = [1, 1]} : vector<8x384xf32> to vector<8x128xf32>
    %cst_3 = arith.constant 0.000000e+00 : f32
    %4 = vector.broadcast %cst_3 : f32 to vector<8x128xf32>
    %5 = arith.maximumf %3, %4 : vector<8x128xf32>
    %6 = arith.truncf %5 : vector<8x128xf32> to vector<8x128xbf16>
    %c0_4 = arith.constant 0 : index
    %c0_5 = arith.constant 0 : index
    %7 = vector.load %arg3[%c0_4, %c0_5] : memref<128x128xbf16, #tpu.memory_space<vmem>>, vector<128x128xbf16>
    %cst_6 = arith.constant dense<0.000000e+00> : vector<8x128xf32>
    %8 = tpu.matmul %6, %7, %cst_6 {dimension_numbers = #tpu.dot_dimension_numbers<[1], [0], [0], [1], [0, 0, 1, 1], [], []>} : vector<8x128xbf16>, vector<128x128xbf16>, vector<8x128xf32> -> vector<8x128xf32>
    %9 = vector.extract_strided_slice %2 {offsets = [0, 128], sizes = [8, 128], strides = [1, 1]} : vector<8x384xf32> to vector<8x128xf32>
    %10 = arith.addf %8, %9 : vector<8x128xf32>
    %cst_7 = arith.constant 0.000000e+00 : f32
    %11 = vector.broadcast %cst_7 : f32 to vector<8x128xf32>
    %12 = arith.maximumf %10, %11 : vector<8x128xf32>
    %13 = arith.truncf %12 : vector<8x128xf32> to vector<8x128xbf16>
    %c0_8 = arith.constant 0 : index
    %c0_9 = arith.constant 0 : index
    %14 = vector.load %arg4[%c0_8, %c0_9] : memref<128x128xbf16, #tpu.memory_space<vmem>>, vector<128x128xbf16>
    %cst_10 = arith.constant dense<0.000000e+00> : vector<8x128xf32>
    %15 = tpu.matmul %13, %14, %cst_10 {dimension_numbers = #tpu.dot_dimension_numbers<[1], [0], [0], [1], [0, 0, 1, 1], [], []>} : vector<8x128xbf16>, vector<128x128xbf16>, vector<8x128xf32> -> vector<8x128xf32>
    %16 = vector.extract_strided_slice %2 {offsets = [0, 256], sizes = [8, 128], strides = [1, 1]} : vector<8x384xf32> to vector<8x128xf32>
    %17 = arith.addf %15, %16 : vector<8x128xf32>
    %cst_11 = arith.constant 0.000000e+00 : f32
    %18 = vector.broadcast %cst_11 : f32 to vector<8x128xf32>
    %19 = arith.maximumf %17, %18 : vector<8x128xf32>
    %20 = arith.truncf %19 : vector<8x128xf32> to vector<8x128xbf16>
    %c0_12 = arith.constant 0 : index
    %c0_13 = arith.constant 0 : index
    %21 = vector.load %arg5[%c0_12, %c0_13] : memref<128x128xbf16, #tpu.memory_space<vmem>>, vector<128x128xbf16>
    %cst_14 = arith.constant dense<0.000000e+00> : vector<8x128xf32>
    %22 = tpu.matmul %20, %21, %cst_14 {dimension_numbers = #tpu.dot_dimension_numbers<[1], [0], [0], [1], [0, 0, 1, 1], [], []>} : vector<8x128xbf16>, vector<128x128xbf16>, vector<8x128xf32> -> vector<8x128xf32>
    %c0_15 = arith.constant 0 : index
    %c0_16 = arith.constant 0 : index
    %23 = vector.load %arg6[%c0_15, %c0_16] : memref<1x128xf32, #tpu.memory_space<vmem>>, vector<1x128xf32>
    %24 = vector.broadcast %23 : vector<1x128xf32> to vector<8x128xf32>
    %25 = arith.addf %22, %24 : vector<8x128xf32>
    %c0_17 = arith.constant 0 : index
    %c0_18 = arith.constant 0 : index
    %26 = vector.load %arg7[%c0_17, %c0_18] : memref<8x128xf32, #tpu.memory_space<vmem>>, vector<8x128xf32>
    tpu.vector_store %arg7[%c0_17, %c0_18], %25 {strides = array<i32>} : memref<8x128xf32, #tpu.memory_space<vmem>>, vector<8x128xf32>,
    return
  }
  func.func @transform_0(%arg0: i32) -> (i32, i32) {
    %c0_i32 = arith.constant 0 : i32
    %c0_i32_0 = arith.constant 0 : i32
    return %arg0, %c0_i32 : i32, i32
  }
  func.func @transform_1(%arg0: i32) -> (i32, i32) {
    %c0_i32 = arith.constant 0 : i32
    %c0_i32_0 = arith.constant 0 : i32
    %c0_i32_1 = arith.constant 0 : i32
    return %c0_i32, %c0_i32_0 : i32, i32
  }
  func.func @transform_2(%arg0: i32) -> (i32, i32) {
    %c0_i32 = arith.constant 0 : i32
    %c0_i32_0 = arith.constant 0 : i32
    %c0_i32_1 = arith.constant 0 : i32
    return %c0_i32, %c0_i32_0 : i32, i32
  }
  func.func @transform_3(%arg0: i32) -> (i32, i32) {
    %c0_i32 = arith.constant 0 : i32
    %c0_i32_0 = arith.constant 0 : i32
    %c0_i32_1 = arith.constant 0 : i32
    return %c0_i32, %c0_i32_0 : i32, i32
  }
  func.func @transform_4(%arg0: i32) -> (i32, i32) {
    %c0_i32 = arith.constant 0 : i32
    %c0_i32_0 = arith.constant 0 : i32
    %c0_i32_1 = arith.constant 0 : i32
    return %c0_i32, %c0_i32_0 : i32, i32
  }
  func.func @transform_5(%arg0: i32) -> (i32, i32) {
    %c0_i32 = arith.constant 0 : i32
    %c0_i32_0 = arith.constant 0 : i32
    %c0_i32_1 = arith.constant 0 : i32
    return %c0_i32, %c0_i32_0 : i32, i32
  }
  func.func @transform_6(%arg0: i32) -> (i32, i32) {
    %c0_i32 = arith.constant 0 : i32
    %c0_i32_0 = arith.constant 0 : i32
    return %arg0, %c0_i32 : i32, i32
  }
}

</mosaic_0001>

<llo_original>
// kernel: forward.1
$region0: #{forward.1}
  #allocation0 [shape = 'u32[]', space=smem, size = 0x4, offset = 0x4, fixed_abs, tag = 'smem constant byte address 0x4 - core index']
  #allocation1 [shape = 'u32[72,128]{1,0:T(1,128)}', space=vmem, size = 0x9000, scoped, tag = 'internal scratch']
  %s0 = inlined_call_operand.vmem [shape: bf16[8,40], index: 0, kind: input, shape index: {}]
  %s1 = inlined_call_operand.hbm [shape: bf16[40,384], index: 1, kind: input, shape index: {}]
  %s2 = inlined_call_operand.hbm [shape: bf16[128,128], index: 2, kind: input, shape index: {}]
  %s3 = inlined_call_operand.hbm [shape: bf16[128,128], index: 3, kind: input, shape index: {}]
  %s4 = inlined_call_operand.hbm [shape: bf16[128,128], index: 4, kind: input, shape index: {}]
  %s5 = inlined_call_operand.vmem [shape: f32[1,128], index: 5, kind: input, shape index: {}]
  %s6 = inlined_call_operand.vmem [shape: f32[8,128], index: 6, kind: output, shape index: {}]
  %s7 = sld [smem:[#allocation0]]
  $region50: #{forward.1} parent=0
    _
  %s9 = ssub.s32 1, %s7
  %s10 = scalar_select 0, %s9, %s7
  $region1: #{forward.1} parent=0
    #allocation2 [shape = 'u8[30720]{0}', space=vmem, size = 0x7800, scoped, tag = 'input window, operand 1, single buffered']
    #allocation3 [shape = 's32[1]{0}', space=sflag, size = 0x4, scoped, tag = 'scoped memory for forward.1']
    #allocation4 [shape = 'u8[32768]{0}', space=vmem, size = 0x8000, scoped, tag = 'input window, operand 2, single buffered']
    #allocation5 [shape = 's32[1]{0}', space=sflag, size = 0x4, scoped, tag = 'scoped memory for forward.1']
    #allocation6 [shape = 'u8[32768]{0}', space=vmem, size = 0x8000, scoped, tag = 'input window, operand 3, single buffered']
    #allocation7 [shape = 'u8[32768]{0}', space=vmem, size = 0x8000, scoped, tag = 'input window, operand 4, single buffered']
    #allocation8 [shape = 's32[1]{0}', space=sflag, size = 0x4, scoped, tag = 'scoped memory for forward.1']
    %11 = vsyncpa [#allocation3], 0
    %12 = vsyncpa [#allocation5], 0
    %13 = vsyncpa [#allocation8], 0
    // Predicated region
    $region2: #{forward.1} parent=1 // pred_check
      _
    $region3: #{forward.1} parent=1 // pred_check_branch
      %15 = sbr.rel (0) target = $region5
    $region4: #{forward.1} parent=1 // pred_region
      _
    $region5: #{forward.1} parent=1 // pred_fallthru
      _
    // Predicated region
    $region6: #{forward.1} parent=1 // pred_check
      _
    $region7: #{forward.1} parent=1 // pred_check_branch
      %17 = sbr.rel (0) target = $region9
    $region8: #{forward.1} parent=1 // pred_region
      %19 = vsyncadd [#allocation3], 0
      %s20 = sshll.u32 %s1, 4
      %s21 = int_to_ptr.hbm [resolvable:$true] %s20
      %s22 = sshll.u32 [#allocation2], 4
      %s23 = int_to_ptr.vmem [resolvable:$true] %s22
      %28 = dma.hbm_to_vmem [thread:$0]  %s21, 960, %s23, [#allocation3], 192, 192, 12
    $region9: #{forward.1} parent=1 // pred_fallthru
      _
    // Predicated region
    $region10: #{forward.1} parent=1 // pred_check
      _
    $region11: #{forward.1} parent=1 // pred_check_branch
      %30 = sbr.rel (0) target = $region13
    $region12: #{forward.1} parent=1 // pred_region
      %32 = vsyncadd [#allocation5], 0
      %s33 = sshll.u32 %s2, 4
      %s34 = int_to_ptr.hbm [resolvable:$true] %s33
      %s35 = sshll.u32 [#allocation4], 4
      %s36 = int_to_ptr.vmem [resolvable:$true] %s35
      %41 = dma.hbm_to_vmem [thread:$0]  %s34, 1024, %s36, [#allocation5], 64, 64, 4
    $region13: #{forward.1} parent=1 // pred_fallthru
      _
    // Predicated region
    $region14: #{forward.1} parent=1 // pred_check
      _
    $region15: #{forward.1} parent=1 // pred_check_branch
      %43 = sbr.rel (0) target = $region17
    $region16: #{forward.1} parent=1 // pred_region
      %45 = vsyncadd [#allocation5], 0
      %s46 = sshll.u32 %s3, 4
      %s47 = int_to_ptr.hbm [resolvable:$true] %s46
      %s48 = sshll.u32 [#allocation6], 4
      %s49 = int_to_ptr.vmem [resolvable:$true] %s48
      %54 = dma.hbm_to_vmem [thread:$0]  %s47, 1024, %s49, [#allocation5], 64, 64, 4
    $region17: #{forward.1} parent=1 // pred_fallthru
      _
    // Predicated region
    $region18: #{forward.1} parent=1 // pred_check
      _
    $region19: #{forward.1} parent=1 // pred_check_branch
      %56 = sbr.rel (0) target = $region21
    $region20: #{forward.1} parent=1 // pred_region
      %58 = vsyncadd [#allocation8], 0
      %s59 = sshll.u32 %s4, 4
      %s60 = int_to_ptr.hbm [resolvable:$true] %s59
      %s61 = sshll.u32 [#allocation7], 4
      %s62 = int_to_ptr.vmem [resolvable:$true] %s61
      %67 = dma.hbm_to_vmem [thread:$0]  %s60, 1024, %s62, [#allocation8], 64, 64, 4
    $region21: #{forward.1} parent=1 // pred_fallthru
      _
    // Predicated region
    $region22: #{forward.1} parent=1 // pred_check
      _
    $region23: #{forward.1} parent=1 // pred_check_branch
      %69 = sbr.rel (0) target = $region25
    $region24: #{forward.1} parent=1 // pred_region
      _
    $region25: #{forward.1} parent=1 // pred_fallthru
      _
    // Predicated region
    $region26: #{forward.1} parent=1 // pred_check
      _
    $region27: #{forward.1} parent=1 // pred_check_branch
      %71 = sbr.rel (0) target = $region29
    $region28: #{forward.1} parent=1 // pred_region
      %73 = dma.done [#allocation3], 960
    $region29: #{forward.1} parent=1 // pred_fallthru
      _
    // Predicated region
    $region30: #{forward.1} parent=1 // pred_check
      _
    $region31: #{forward.1} parent=1 // pred_check_branch
      %75 = sbr.rel (0) target = $region33
    $region32: #{forward.1} parent=1 // pred_region
      %77 = dma.done [#allocation5], 1024
    $region33: #{forward.1} parent=1 // pred_fallthru
      _
    // Predicated region
    $region34: #{forward.1} parent=1 // pred_check
      _
    $region35: #{forward.1} parent=1 // pred_check_branch
      %79 = sbr.rel (0) target = $region37
    $region36: #{forward.1} parent=1 // pred_region
      %81 = dma.done [#allocation5], 1024
    $region37: #{forward.1} parent=1 // pred_fallthru
      _
    // Predicated region
    $region38: #{forward.1} parent=1 // pred_check
      _
    $region39: #{forward.1} parent=1 // pred_check_branch
      %83 = sbr.rel (0) target = $region41
    $region40: #{forward.1} parent=1 // pred_region
      %85 = dma.done [#allocation8], 1024
    $region41: #{forward.1} parent=1 // pred_fallthru
      _
    %v87 = vld [vmem:[%s0] sm:$0xf]
    %v88 = vld [vmem:[#allocation2] sm:$0xff]
    %v89 = vld [vmem:[#allocation2 + $0x8] sm:$0xf]
    %v90 = vld [vmem:[#allocation2 + $0xc] sm:$0xff]
    %v91 = vld [vmem:[#allocation2 + $0x14] sm:$0xf]
    %v92 = vld [vmem:[#allocation2 + $0x18] sm:$0xff]
    %v93 = vld [vmem:[#allocation2 + $0x20] sm:$0xf]
    %v94 = vld [vmem:[#allocation2 + $0x24] sm:$0xff]
    %v95 = vld [vmem:[#allocation2 + $0x2c] sm:$0xf]
    %v96 = vld [vmem:[#allocation2 + $0x30] sm:$0xff]
    %v97 = vld [vmem:[#allocation2 + $0x38] sm:$0xf]
    %v108 = vunpack.c.l.b16 %v88
    %v109 = vunpack.c.h.b16 %v88
    %v110 = vunpack.c.l.b16 %v89
    %v111 = vunpack.c.l.b16 %v90
    %v112 = vunpack.c.h.b16 %v90
    %v113 = vunpack.c.l.b16 %v91
    %v114 = vunpack.c.l.b16 %v92
    %v115 = vunpack.c.h.b16 %v92
    %v116 = vunpack.c.l.b16 %v93
    %v117 = vunpack.c.l.b16 %v94
    %v118 = vunpack.c.h.b16 %v94
    %v119 = vunpack.c.l.b16 %v95
    %v120 = vunpack.c.l.b16 %v96
    %v121 = vunpack.c.h.b16 %v96
    %v122 = vunpack.c.l.b16 %v97
    %v123 = vpack.c.b16 %v111, %v108
    %v124 = vpack.c.b16 %v112, %v109
    %v125 = vpack.c.b16 %v113, %v110
    %v126 = vpack.c.b16 %v117, %v114
    %v127 = vpack.c.b16 %v118, %v115
    %v128 = vpack.c.b16 %v119, %v116
    %v129 = vpack.c.b16 %v120, %v120
    %v130 = vpack.c.b16 %v121, %v121
    %v131 = vpack.c.b16 %v122, %v122
    %vm138 = vcmask 326656
    %v140 = vsel %vm138, %v87, 0
    %vm142 = vcmask 1043456
    %v144 = vsel %vm142, %v129, 0
    %v147 = vsel %vm142, %v130, 0
    %v150 = vsel %vm142, %v131, 0
    %152 = vmatpush.bf16.msra.mxu0 0
    %153 = vmatpush.bf16.msra.mxu0 0
    %154 = vmatpush.bf16.msra.mxu0 0
    %155 = vmatpush.bf16.msra.mxu0 0
    %156 = vmatpush.bf16.msra.mxu0 0
    %157 = vmatpush.bf16.msra.mxu0 %v144
    %158 = vmatpush.bf16.msra.mxu0 %v126
    %159 = vmatpush.bf16.msra.mxu0 %v123
    %160 = vmatmul.bf16.gmra.mxu0 %v140
    %v161 = vpop.f32.mrf.mxu0
    %v162 = vadd.f32 0.0, %v161
    %v163 = vpop.f32.mrf.mxu0
    %164 = vdwg.mxu0
    %165 = vmatpush.bf16.msra.mxu0 0
    %166 = vmatpush.bf16.msra.mxu0 0
    %167 = vmatpush.bf16.msra.mxu0 0
    %168 = vmatpush.bf16.msra.mxu0 0
    %169 = vmatpush.bf16.msra.mxu0 0
    %170 = vmatpush.bf16.msra.mxu0 %v147
    %171 = vmatpush.bf16.msra.mxu0 %v127
    %172 = vmatpush.bf16.msra.mxu0 %v124
    %173 = vmatmul.bf16.gmra.mxu0 %v140
    %v174 = vpop.f32.mrf.mxu0
    %v175 = vadd.f32 0.0, %v174
    %v176 = vpop.f32.mrf.mxu0
    %177 = vdwg.mxu0
    %178 = vmatpush.bf16.msra.mxu0 0
    %179 = vmatpush.bf16.msra.mxu0 0
    %180 = vmatpush.bf16.msra.mxu0 0
    %181 = vmatpush.bf16.msra.mxu0 0
    %182 = vmatpush.bf16.msra.mxu0 0
    %183 = vmatpush.bf16.msra.mxu0 %v150
    %184 = vmatpush.bf16.msra.mxu0 %v128
    %185 = vmatpush.bf16.msra.mxu0 %v125
    %186 = vmatmul.bf16.gmra.mxu0 %v140
    %v187 = vpop.f32.mrf.mxu0
    %v188 = vadd.f32 0.0, %v187
    %v189 = vpop.f32.mrf.mxu0
    %190 = vdwg.mxu0
    %v191 = vmax.f32 %v162, 0.0
    %v192 = vpack.c.bf16 %v191, %v191
    %v193 = vld [vmem:[#allocation4] sm:$0xf]
    %v194 = vld [vmem:[#allocation4 + $0x4] sm:$0xf]
    %v195 = vld [vmem:[#allocation4 + $0x8] sm:$0xf]
    %v196 = vld [vmem:[#allocation4 + $0xc] sm:$0xf]
    %v197 = vld [vmem:[#allocation4 + $0x10] sm:$0xf]
    %v198 = vld [vmem:[#allocation4 + $0x14] sm:$0xf]
    %v199 = vld [vmem:[#allocation4 + $0x18] sm:$0xf]
    %v200 = vld [vmem:[#allocation4 + $0x1c] sm:$0xf]
    %v201 = vld [vmem:[#allocation4 + $0x20] sm:$0xf]
    %v202 = vld [vmem:[#allocation4 + $0x24] sm:$0xf]
    %v203 = vld [vmem:[#allocation4 + $0x28] sm:$0xf]
    %v204 = vld [vmem:[#allocation4 + $0x2c] sm:$0xf]
    %v205 = vld [vmem:[#allocation4 + $0x30] sm:$0xf]
    %v206 = vld [vmem:[#allocation4 + $0x34] sm:$0xf]
    %v207 = vld [vmem:[#allocation4 + $0x38] sm:$0xf]
    %v208 = vld [vmem:[#allocation4 + $0x3c] sm:$0xf]
    %v225 = vunpack.c.l.b16 %v193
    %v226 = vunpack.c.l.b16 %v194
    %v227 = vunpack.c.l.b16 %v195
    %v228 = vunpack.c.l.b16 %v196
    %v229 = vunpack.c.l.b16 %v197
    %v230 = vunpack.c.l.b16 %v198
    %v231 = vunpack.c.l.b16 %v199
    %v232 = vunpack.c.l.b16 %v200
    %v233 = vunpack.c.l.b16 %v201
    %v234 = vunpack.c.l.b16 %v202
    %v235 = vunpack.c.l.b16 %v203
    %v236 = vunpack.c.l.b16 %v204
    %v237 = vunpack.c.l.b16 %v205
    %v238 = vunpack.c.l.b16 %v206
    %v239 = vunpack.c.l.b16 %v207
    %v240 = vunpack.c.l.b16 %v208
    %v241 = vpack.c.b16 %v226, %v225
    %v242 = vpack.c.b16 %v228, %v227
    %v243 = vpack.c.b16 %v230, %v229
    %v244 = vpack.c.b16 %v232, %v231
    %v245 = vpack.c.b16 %v234, %v233
    %v246 = vpack.c.b16 %v236, %v235
    %v247 = vpack.c.b16 %v238, %v237
    %v248 = vpack.c.b16 %v240, %v239
    %257 = vmatpush.bf16.msra.mxu0 %v248
    %258 = vmatpush.bf16.msra.mxu0 %v247
    %259 = vmatpush.bf16.msra.mxu0 %v246
    %260 = vmatpush.bf16.msra.mxu0 %v245
    %261 = vmatpush.bf16.msra.mxu0 %v244
    %262 = vmatpush.bf16.msra.mxu0 %v243
    %263 = vmatpush.bf16.msra.mxu0 %v242
    %264 = vmatpush.bf16.msra.mxu0 %v241
    %265 = vmatmul.bf16.gmra.mxu0 %v192
    %v266 = vpop.f32.mrf.mxu0
    %v267 = vadd.f32 %v175, %v266
    %v268 = vpop.f32.mrf.mxu0
    %269 = vdwg.mxu0
    %v270 = vmax.f32 %v267, 0.0
    %v271 = vpack.c.bf16 %v270, %v270
    %v272 = vld [vmem:[#allocation6] sm:$0xf]
    %v273 = vld [vmem:[#allocation6 + $0x4] sm:$0xf]
    %v274 = vld [vmem:[#allocation6 + $0x8] sm:$0xf]
    %v275 = vld [vmem:[#allocation6 + $0xc] sm:$0xf]
    %v276 = vld [vmem:[#allocation6 + $0x10] sm:$0xf]
    %v277 = vld [vmem:[#allocation6 + $0x14] sm:$0xf]
    %v278 = vld [vmem:[#allocation6 + $0x18] sm:$0xf]
    %v279 = vld [vmem:[#allocation6 + $0x1c] sm:$0xf]
    %v280 = vld [vmem:[#allocation6 + $0x20] sm:$0xf]
    %v281 = vld [vmem:[#allocation6 + $0x24] sm:$0xf]
    %v282 = vld [vmem:[#allocation6 + $0x28] sm:$0xf]
    %v283 = vld [vmem:[#allocation6 + $0x2c] sm:$0xf]
    %v284 = vld [vmem:[#allocation6 + $0x30] sm:$0xf]
    %v285 = vld [vmem:[#allocation6 + $0x34] sm:$0xf]
    %v286 = vld [vmem:[#allocation6 + $0x38] sm:$0xf]
    %v287 = vld [vmem:[#allocation6 + $0x3c] sm:$0xf]
    %v304 = vunpack.c.l.b16 %v272
    %v305 = vunpack.c.l.b16 %v273
    %v306 = vunpack.c.l.b16 %v274
    %v307 = vunpack.c.l.b16 %v275
    %v308 = vunpack.c.l.b16 %v276
    %v309 = vunpack.c.l.b16 %v277
    %v310 = vunpack.c.l.b16 %v278
    %v311 = vunpack.c.l.b16 %v279
    %v312 = vunpack.c.l.b16 %v280
    %v313 = vunpack.c.l.b16 %v281
    %v314 = vunpack.c.l.b16 %v282
    %v315 = vunpack.c.l.b16 %v283
    %v316 = vunpack.c.l.b16 %v284
    %v317 = vunpack.c.l.b16 %v285
    %v318 = vunpack.c.l.b16 %v286
    %v319 = vunpack.c.l.b16 %v287
    %v320 = vpack.c.b16 %v305, %v304
    %v321 = vpack.c.b16 %v307, %v306
    %v322 = vpack.c.b16 %v309, %v308
    %v323 = vpack.c.b16 %v311, %v310
    %v324 = vpack.c.b16 %v313, %v312
    %v325 = vpack.c.b16 %v315, %v314
    %v326 = vpack.c.b16 %v317, %v316
    %v327 = vpack.c.b16 %v319, %v318
    %336 = vmatpush.bf16.msra.mxu0 %v327
    %337 = vmatpush.bf16.msra.mxu0 %v326
    %338 = vmatpush.bf16.msra.mxu0 %v325
    %339 = vmatpush.bf16.msra.mxu0 %v324
    %340 = vmatpush.bf16.msra.mxu0 %v323
    %341 = vmatpush.bf16.msra.mxu0 %v322
    %342 = vmatpush.bf16.msra.mxu0 %v321
    %343 = vmatpush.bf16.msra.mxu0 %v320
    %344 = vmatmul.bf16.gmra.mxu0 %v271
    %v345 = vpop.f32.mrf.mxu0
    %v346 = vadd.f32 %v188, %v345
    %v347 = vpop.f32.mrf.mxu0
    %348 = vdwg.mxu0
    %v349 = vmax.f32 %v346, 0.0
    %v350 = vpack.c.bf16 %v349, %v349
    %v351 = vld [vmem:[#allocation7] sm:$0xf]
    %v352 = vld [vmem:[#allocation7 + $0x4] sm:$0xf]
    %v353 = vld [vmem:[#allocation7 + $0x8] sm:$0xf]
    %v354 = vld [vmem:[#allocation7 + $0xc] sm:$0xf]
    %v355 = vld [vmem:[#allocation7 + $0x10] sm:$0xf]
    %v356 = vld [vmem:[#allocation7 + $0x14] sm:$0xf]
    %v357 = vld [vmem:[#allocation7 + $0x18] sm:$0xf]
    %v358 = vld [vmem:[#allocation7 + $0x1c] sm:$0xf]
    %v359 = vld [vmem:[#allocation7 + $0x20] sm:$0xf]
    %v360 = vld [vmem:[#allocation7 + $0x24] sm:$0xf]
    %v361 = vld [vmem:[#allocation7 + $0x28] sm:$0xf]
    %v362 = vld [vmem:[#allocation7 + $0x2c] sm:$0xf]
    %v363 = vld [vmem:[#allocation7 + $0x30] sm:$0xf]
    %v364 = vld [vmem:[#allocation7 + $0x34] sm:$0xf]
    %v365 = vld [vmem:[#allocation7 + $0x38] sm:$0xf]
    %v366 = vld [vmem:[#allocation7 + $0x3c] sm:$0xf]
    %v367 = vld [vmem:[%s5] sm:$0x1]
    %v369 = vperm.slane %v367, 0
    %v387 = vunpack.c.l.b16 %v351
    %v388 = vunpack.c.l.b16 %v352
    %v389 = vunpack.c.l.b16 %v353
    %v390 = vunpack.c.l.b16 %v354
    %v391 = vunpack.c.l.b16 %v355
    %v392 = vunpack.c.l.b16 %v356
    %v393 = vunpack.c.l.b16 %v357
    %v394 = vunpack.c.l.b16 %v358
    %v395 = vunpack.c.l.b16 %v359
    %v396 = vunpack.c.l.b16 %v360
    %v397 = vunpack.c.l.b16 %v361
    %v398 = vunpack.c.l.b16 %v362
    %v399 = vunpack.c.l.b16 %v363
    %v400 = vunpack.c.l.b16 %v364
    %v401 = vunpack.c.l.b16 %v365
    %v402 = vunpack.c.l.b16 %v366
    %v403 = vpack.c.b16 %v388, %v387
    %v404 = vpack.c.b16 %v390, %v389
    %v405 = vpack.c.b16 %v392, %v391
    %v406 = vpack.c.b16 %v394, %v393
    %v407 = vpack.c.b16 %v396, %v395
    %v408 = vpack.c.b16 %v398, %v397
    %v409 = vpack.c.b16 %v400, %v399
    %v410 = vpack.c.b16 %v402, %v401
    %419 = vmatpush.bf16.msra.mxu0 %v410
    %420 = vmatpush.bf16.msra.mxu0 %v409
    %421 = vmatpush.bf16.msra.mxu0 %v408
    %422 = vmatpush.bf16.msra.mxu0 %v407
    %423 = vmatpush.bf16.msra.mxu0 %v406
    %424 = vmatpush.bf16.msra.mxu0 %v405
    %425 = vmatpush.bf16.msra.mxu0 %v404
    %426 = vmatpush.bf16.msra.mxu0 %v403
    %427 = vmatmul.bf16.gmra.mxu0 %v350
    %v428 = vpop.f32.mrf.mxu0
    %v429 = vadd.f32 %v369, %v428
    %v430 = vpop.f32.mrf.mxu0
    %431 = vdwg.mxu0
    %432 = vst [vmem:[%s6] sm:$0xff] %v429
    // Predicated region
    $region42: #{forward.1} parent=1 // pred_check
      _
    $region43: #{forward.1} parent=1 // pred_check_branch
      %434 = sbr.rel (0) target = $region45
    $region44: #{forward.1} parent=1 // pred_region
      _
    $region45: #{forward.1} parent=1 // pred_fallthru
      _
    // Predicated region
    $region46: #{forward.1} parent=1 // pred_check
      _
    $region47: #{forward.1} parent=1 // pred_check_branch
      %436 = sbr.rel (0) target = $region49
    $region48: #{forward.1} parent=1 // pred_region
      _
    $region49: #{forward.1} parent=1 // pred_fallthru
      _
    %437 = vsyncpa [#allocation3], 1
    %438 = vsyncpa [#allocation5], 1
    %439 = vsyncpa [#allocation8], 1

</llo_original>
